<compile_context>
chip_gen: v7x
topology: tpu7x:2x2x1
jax: 0.10.0
libtpu: 0.0.40
codegen_flags: <defaults>
</compile_context>

<pallas_src>
from functools import partial

import jax
import jax.numpy as jnp
from jax.experimental import pallas as pl
from jax.experimental.pallas import tpu as pltpu


def _round_up(x, m):
    return (x + m - 1) // m * m


def _space_to_depth_kernel(x_ref, o_ref, *, block_size):
    # x_ref: (c_tile * H, W)          lane-dense input block, rows ordered (c, h)
    # o_ref: (b, b, c_tile * dH, dW)  per-phase output slabs, rows ordered (c, dh)
    b = block_size
    n_rows = o_ref.shape[2]          # c_tile * dH
    W = x_ref.shape[1]
    dW = W // b

    # Constant 0/1 lane selectors: sel[bw][w, k] == 1  iff  w == k*b + bw.
    w_idx = jax.lax.broadcasted_iota(jnp.int32, (W, dW), 0)
    k_idx = jax.lax.broadcasted_iota(jnp.int32, (W, dW), 1)
    sels = [
        jnp.where(w_idx == k_idx * b + bw, 1.0, 0.0).astype(jnp.float32)
        for bw in range(b)
    ]

    for bh in range(b):              # static, tiny unrolled loops (b*b total)
        # Rows (c, h) with h % b == bh, in (c, dh) order: sublane-strided load.
        rows = x_ref[pl.ds(bh, n_rows, stride=b), :].astype(jnp.float32)
        for bw in range(b):
            # De-interleave the bw phase along lanes via the 0/1 selector on
            # the otherwise-idle MXU: slab[q, k] = rows[q, k*b + bw].
            slab = jnp.dot(rows, sels[bw], preferred_element_type=jnp.float32)
            o_ref[bh, bw, :, :] = slab.astype(o_ref.dtype)


def space_to_depth(x, block_size, *, c_tile=None,
                   vmem_budget_bytes=12 * 1024 * 1024):
    B, C, H, W = x.shape
    b = int(block_size)
    if H % b or W % b:
        raise ValueError("spatial dims must be divisible by block_size")
    dH, dW = H // b, W // b
    itemsize = jnp.dtype(x.dtype).itemsize

    def block_bytes(ct):
        # Double-buffered, VMEM-padded footprint of one grid step.
        in_b = _round_up(ct * H, 8) * _round_up(W, 128) * itemsize
        out_b = b * b * _round_up(ct * dH, 8) * _round_up(dW, 128) * itemsize
        return 2 * (in_b + out_b)

    if c_tile is None:
        divisors = [d for d in range(1, C + 1) if C % d == 0]
        # (8,128) rule: a C tile smaller than C must keep the second-to-last
        # block dims (c_tile*dH / c_tile*H) multiples of 8.
        valid = [d for d in divisors if d == C or (d * dH) % 8 == 0]
        fitting = [d for d in valid if block_bytes(d) <= vmem_budget_bytes]
        c_tile = max(fitting) if fitting else min(valid)
    else:
        assert C % c_tile == 0 and (c_tile == C or (c_tile * dH) % 8 == 0)
    n_ct = C // c_tile

    # Pure view (no data movement): rows = (c, h), lanes = W.
    x2 = x.reshape(B, C * H, W)

    vmem_limit = int(max(32 * 1024 * 1024,
                         min(96 * 1024 * 1024, 2 * block_bytes(c_tile))))

    out5 = pl.pallas_call(
        partial(_space_to_depth_kernel, block_size=b),
        out_shape=jax.ShapeDtypeStruct((B, b, b, C * dH, dW), x.dtype),
        grid=(B, n_ct),
        in_specs=[
            pl.BlockSpec((None, c_tile * H, W), lambda n, ci: (n, ci, 0)),
        ],
        out_specs=pl.BlockSpec((None, b, b, c_tile * dH, dW),
                               lambda n, ci: (n, 0, 0, ci, 0)),
        compiler_params=pltpu.CompilerParams(
            dimension_semantics=("parallel", "parallel"),
            vmem_limit_bytes=vmem_limit,
        ),
        cost_estimate=pl.CostEstimate(
            flops=2 * B * C * H * W * W,          # 0/1-selector matmuls
            transcendentals=0,
            bytes_accessed=2 * B * C * H * W * itemsize,
        ),
    )(x2)

    # Pure view: (n, bh, bw, c*dH + dh, dw) -> (n, (bh*b + bw)*C + c, dh, dw).
    return out5.reshape(B, b * b * C, dH, dW)


class SpaceToDepth:
    """JAX/Pallas equivalent of the PyTorch SpaceToDepth module (no params)."""

    def __init__(self, block_size):
        self.block_size = block_size
        self.block_size_sq = block_size * block_size

    def forward(self, x, *inputs):
        return [space_to_depth(x, self.block_size)] + list(inputs)

    __call__ = forward


if __name__ == "__main__":
    key = jax.random.PRNGKey(0)
    B, C, H, W = 2, 4, 16, 16
    block_size = 2

    x = jax.random.normal(key, (B, C, H, W), dtype=jnp.float32)
    # Use bf16-representable f32 values so the 0/1-selector matmul is bit-exact
    # under any MXU precision mode (the kernel is a pure permutation).
    x = x.astype(jnp.bfloat16).astype(jnp.float32)
    extra = jnp.ones((3,), dtype=jnp.float32)  # exercise the *inputs passthrough

    mod = SpaceToDepth(block_size)
    outs = mod(x, extra)
    out = jax.block_until_ready(outs[0])

    # Pure-JAX reference reproducing the torch module's semantics exactly.
    b = block_size
    dH, dW = H // b, W // b
    ref = jnp.transpose(
        x.reshape(B, C, dH, b, dW, b), (0, 3, 5, 1, 2, 4)
    ).reshape(B, b * b * C, dH, dW)

    assert out.shape == (B, b * b * C, dH, dW)
    assert out.dtype == x.dtype
    assert jnp.array_equal(out, ref)
    assert jnp.array_equal(outs[1], extra)
    print("KERNEL_OK")
</pallas_src>

<mosaic_0001>
module attributes {stable_mosaic.version = 11 : i64} {
  func.func @_space_to_depth_kernel(%arg0: i32, %arg1: i32, %arg2: memref<1x64x16xf32, #tpu.memory_space<vmem>>, %arg3: memref<1x2x2x32x8xf32, #tpu.memory_space<vmem>>) attributes {dimension_semantics = [#tpu.dimension_semantics<parallel>, #tpu.dimension_semantics<parallel>], iteration_bounds = array<i64: 2, 1>, scalar_prefetch = 0 : i64, scratch_operands = 0 : i64, tpu.core_type = #tpu.core_type<tc>, window_params = [{transform_indices = @transform_0, window_bounds = array<i64: 1, 64, 16>}, {transform_indices = @transform_1, window_bounds = array<i64: 1, 2, 2, 32, 8>}]} {
    %0 = tpu.iota {dimensions = array<i32: 0>} : vector<16x8xi32>
    %1 = tpu.iota {dimensions = array<i32: 1>} : vector<16x8xi32>
    %c2_i32 = arith.constant 2 : i32
    %2 = vector.broadcast %c2_i32 : i32 to vector<16x8xi32>
    %3 = arith.muli %1, %2 : vector<16x8xi32>
    %c0_i32 = arith.constant 0 : i32
    %4 = vector.broadcast %c0_i32 : i32 to vector<16x8xi32>
    %5 = arith.addi %3, %4 : vector<16x8xi32>
    %6 = arith.cmpi eq, %0, %5 : vector<16x8xi32>
    %cst = arith.constant 1.000000e+00 : f32
    %cst_0 = arith.constant 0.000000e+00 : f32
    %7 = vector.broadcast %cst : f32 to vector<16x8xf32>
    %8 = vector.broadcast %cst_0 : f32 to vector<16x8xf32>
    %9 = arith.select %6, %7, %8 : vector<16x8xi1>, vector<16x8xf32>
    %c2_i32_1 = arith.constant 2 : i32
    %10 = vector.broadcast %c2_i32_1 : i32 to vector<16x8xi32>
    %11 = arith.muli %1, %10 : vector<16x8xi32>
    %c1_i32 = arith.constant 1 : i32
    %12 = vector.broadcast %c1_i32 : i32 to vector<16x8xi32>
    %13 = arith.addi %11, %12 : vector<16x8xi32>
    %14 = arith.cmpi eq, %0, %13 : vector<16x8xi32>
    %cst_2 = arith.constant 1.000000e+00 : f32
    %cst_3 = arith.constant 0.000000e+00 : f32
    %15 = vector.broadcast %cst_2 : f32 to vector<16x8xf32>
    %16 = vector.broadcast %cst_3 : f32 to vector<16x8xf32>
    %17 = arith.select %14, %15, %16 : vector<16x8xi1>, vector<16x8xf32>
    %c0 = arith.constant 0 : index
    %c0_4 = arith.constant 0 : index
    %c0_5 = arith.constant 0 : index
    %18 = tpu.strided_load %arg2[%c0, %c0_4, %c0_5] {strides = array<i32: 1, 2, 1>} : memref<1x64x16xf32, #tpu.memory_space<vmem>>, vector<1x32x16xf32>
    %19 = vector.shape_cast %18 : vector<1x32x16xf32> to vector<32x16xf32>
    %cst_6 = arith.constant dense<0.000000e+00> : vector<32x8xf32>
    %20 = tpu.matmul %19, %9, %cst_6 {dimension_numbers = #tpu.dot_dimension_numbers<[1], [0], [0], [1], [0, 0, 1, 1], [], []>} : vector<32x16xf32>, vector<16x8xf32>, vector<32x8xf32> -> vector<32x8xf32>
    %c0_7 = arith.constant 0 : index
    %c0_8 = arith.constant 0 : index
    %c0_9 = arith.constant 0 : index
    %c0_10 = arith.constant 0 : index
    %c0_11 = arith.constant 0 : index
    %21 = vector.load %arg3[%c0_7, %c0_8, %c0_9, %c0_10, %c0_11] : memref<1x2x2x32x8xf32, #tpu.memory_space<vmem>>, vector<1x1x1x32x8xf32>
    %22 = vector.shape_cast %21 : vector<1x1x1x32x8xf32> to vector<32x8xf32>
    %23 = vector.shape_cast %20 : vector<32x8xf32> to vector<1x1x1x32x8xf32>
    tpu.vector_store %arg3[%c0_7, %c0_8, %c0_9, %c0_10, %c0_11], %23 {strides = array<i32>} : memref<1x2x2x32x8xf32, #tpu.memory_space<vmem>>, vector<1x1x1x32x8xf32>,
    %cst_12 = arith.constant dense<0.000000e+00> : vector<32x8xf32>
    %24 = tpu.matmul %19, %17, %cst_12 {dimension_numbers = #tpu.dot_dimension_numbers<[1], [0], [0], [1], [0, 0, 1, 1], [], []>} : vector<32x16xf32>, vector<16x8xf32>, vector<32x8xf32> -> vector<32x8xf32>
    %c0_13 = arith.constant 0 : index
    %c0_14 = arith.constant 0 : index
    %c1 = arith.constant 1 : index
    %c0_15 = arith.constant 0 : index
    %c0_16 = arith.constant 0 : index
    %25 = vector.load %arg3[%c0_13, %c0_14, %c1, %c0_15, %c0_16] : memref<1x2x2x32x8xf32, #tpu.memory_space<vmem>>, vector<1x1x1x32x8xf32>
    %26 = vector.shape_cast %25 : vector<1x1x1x32x8xf32> to vector<32x8xf32>
    %27 = vector.shape_cast %24 : vector<32x8xf32> to vector<1x1x1x32x8xf32>
    tpu.vector_store %arg3[%c0_13, %c0_14, %c1, %c0_15, %c0_16], %27 {strides = array<i32>} : memref<1x2x2x32x8xf32, #tpu.memory_space<vmem>>, vector<1x1x1x32x8xf32>,
    %c0_17 = arith.constant 0 : index
    %c1_18 = arith.constant 1 : index
    %c0_19 = arith.constant 0 : index
    %28 = tpu.strided_load %arg2[%c0_17, %c1_18, %c0_19] {strides = array<i32: 1, 2, 1>} : memref<1x64x16xf32, #tpu.memory_space<vmem>>, vector<1x32x16xf32>
    %29 = vector.shape_cast %28 : vector<1x32x16xf32> to vector<32x16xf32>
    %cst_20 = arith.constant dense<0.000000e+00> : vector<32x8xf32>
    %30 = tpu.matmul %29, %9, %cst_20 {dimension_numbers = #tpu.dot_dimension_numbers<[1], [0], [0], [1], [0, 0, 1, 1], [], []>} : vector<32x16xf32>, vector<16x8xf32>, vector<32x8xf32> -> vector<32x8xf32>
    %c0_21 = arith.constant 0 : index
    %c1_22 = arith.constant 1 : index
    %c0_23 = arith.constant 0 : index
    %c0_24 = arith.constant 0 : index
    %c0_25 = arith.constant 0 : index
    %31 = vector.load %arg3[%c0_21, %c1_22, %c0_23, %c0_24, %c0_25] : memref<1x2x2x32x8xf32, #tpu.memory_space<vmem>>, vector<1x1x1x32x8xf32>
    %32 = vector.shape_cast %31 : vector<1x1x1x32x8xf32> to vector<32x8xf32>
    %33 = vector.shape_cast %30 : vector<32x8xf32> to vector<1x1x1x32x8xf32>
    tpu.vector_store %arg3[%c0_21, %c1_22, %c0_23, %c0_24, %c0_25], %33 {strides = array<i32>} : memref<1x2x2x32x8xf32, #tpu.memory_space<vmem>>, vector<1x1x1x32x8xf32>,
    %cst_26 = arith.constant dense<0.000000e+00> : vector<32x8xf32>
    %34 = tpu.matmul %29, %17, %cst_26 {dimension_numbers = #tpu.dot_dimension_numbers<[1], [0], [0], [1], [0, 0, 1, 1], [], []>} : vector<32x16xf32>, vector<16x8xf32>, vector<32x8xf32> -> vector<32x8xf32>
    %c0_27 = arith.constant 0 : index
    %c1_28 = arith.constant 1 : index
    %c1_29 = arith.constant 1 : index
    %c0_30 = arith.constant 0 : index
    %c0_31 = arith.constant 0 : index
    %35 = vector.load %arg3[%c0_27, %c1_28, %c1_29, %c0_30, %c0_31] : memref<1x2x2x32x8xf32, #tpu.memory_space<vmem>>, vector<1x1x1x32x8xf32>
    %36 = vector.shape_cast %35 : vector<1x1x1x32x8xf32> to vector<32x8xf32>
    %37 = vector.shape_cast %34 : vector<32x8xf32> to vector<1x1x1x32x8xf32>
    tpu.vector_store %arg3[%c0_27, %c1_28, %c1_29, %c0_30, %c0_31], %37 {strides = array<i32>} : memref<1x2x2x32x8xf32, #tpu.memory_space<vmem>>, vector<1x1x1x32x8xf32>,
    return
  }
  func.func @transform_0(%arg0: i32, %arg1: i32) -> (i32, i32, i32) {
    %c0_i32 = arith.constant 0 : i32
    %c0_i32_0 = arith.constant 0 : i32
    return %arg0, %arg1, %c0_i32 : i32, i32, i32
  }
  func.func @transform_1(%arg0: i32, %arg1: i32) -> (i32, i32, i32, i32, i32) {
    %c0_i32 = arith.constant 0 : i32
    %c0_i32_0 = arith.constant 0 : i32
    %c0_i32_1 = arith.constant 0 : i32
    %c0_i32_2 = arith.constant 0 : i32
    return %arg0, %c0_i32, %c0_i32_0, %arg1, %c0_i32_1 : i32, i32, i32, i32, i32
  }
}

</mosaic_0001>

<llo_original>
// kernel: tpu_custom_call.1
$region0: #{tpu_custom_call.1}
  #allocation0 [shape = 'u32[]', space=smem, size = 0x4, offset = 0x4, fixed_abs, tag = 'smem constant byte address 0x4 - core index']
  #allocation1 [shape = 'u32[144,128]{1,0:T(1,128)}', space=vmem, size = 0x12000, scoped, tag = 'internal scratch']
  %s0 = inlined_call_operand.vmem [shape: f32[2,64,16], index: 0, kind: input, shape index: {}]
  %s1 = inlined_call_operand.vmem [shape: f32[2,2,2,32,8], index: 1, kind: output, shape index: {}]
  %s2 = sld [smem:[#allocation0]]
  $region37: #{tpu_custom_call.1} parent=0
    _
  %s4 = ssub.s32 1, %s2
  %s5 = scalar_select 0, %s4, %s2
  loop: start=0, step=1, limit=4
  $region2: #{tpu_custom_call.1} parent=0 // loop_pre_header
    _
  $region3: #{tpu_custom_call.1} parent=0 // loop_header
    %s7 = sphi 0, %s11
    %p8 = scmp.ge.s32.totalorder %s7, 4
    %s14 = sphi 0, %s26
    %s15 = sphi 0, %s22
    %s16 = sphi 0, %s14
    %s17 = sphi 0, %s15
    %s18 = sphi 0, %s16
    %s19 = sphi 0, %s17
    %s31 = sphi 0, %s33
    %s34 = sphi 0, %s31
    %s35 = sphi 0, %s34
    %s51 = sphi 0, %s35
    %s59 = sphi 0, %s61
    %s62 = sphi 0, %s59
    %s63 = sphi 0, %s62
    %s79 = sphi 0, %s63
  $region4: #{tpu_custom_call.1} parent=0 // loop_header_branch
    %10 = sbr.rel (%p8) target = $region8
  $region5: #{tpu_custom_call.1} parent=0 // loop_body
    %s12 = ssub.s32 %s7, 1
    %s13 = ssub.s32 %s7, 2
    %s20 = sadd.s32 1, %s15
    %p21 = scmp.ge.s32.totalorder %s20, 1
    %s22 = scalar_select %p21, 0, %s20
    %s23 = sadd.s32 1, %s14
    %s24 = scalar_select %p21, %s23, %s14
    %p25 = scmp.ge.s32.totalorder %s24, 2
    %s26 = scalar_select %p25, 0, %s24
    %s27 = ssub.s32 %s14, %s26
    %s28 = ssub.s32 %s15, %s22
    %s29 = sor.u32 %s27, %s28
    %p30 = scmp.eq.s32.totalorder %s29, 0
    %s32 = sadd.s32 %s31, 1
    %s33 = scalar_select %p30, %s31, %s32
    %p36 = pneg %p30
    %p37 = scmp.eq.s32.totalorder %s7, 1
    %p38 = por %p36, %p37
    %p39 = scmp.ne.s32.totalorder %s31, %s34
    %p40 = scmp.eq.s32.totalorder %s7, 0
    %p41 = por %p39, %p40
    %p42 = scmp.ne.s32.totalorder %s31, %s34
    %p43 = scmp.eq.s32.totalorder %s12, 1
    %p44 = por %p42, %p43
    %p45 = scmp.ne.s32.totalorder %s34, %s35
    %p46 = scmp.eq.s32.totalorder %s12, 0
    %p47 = por %p45, %p46
    %p48 = scmp.ne.s32.totalorder %s34, %s35
    %p49 = scmp.eq.s32.totalorder %s13, 1
    %p50 = por %p48, %p49
    %p52 = scmp.ne.s32.totalorder %s35, %s51
    %p53 = scmp.eq.s32.totalorder %s13, 0
    %p54 = por %p52, %p53
    %s55 = ssub.s32 %s14, %s26
    %s56 = ssub.s32 %s15, %s22
    %s57 = sor.u32 %s55, %s56
    %p58 = scmp.eq.s32.totalorder %s57, 0
    %s60 = sadd.s32 %s59, 1
    %s61 = scalar_select %p58, %s59, %s60
    %p64 = pneg %p58
    %p65 = scmp.eq.s32.totalorder %s7, 1
    %p66 = por %p64, %p65
    %p67 = scmp.ne.s32.totalorder %s59, %s62
    %p68 = scmp.eq.s32.totalorder %s7, 0
    %p69 = por %p67, %p68
    %p70 = scmp.ne.s32.totalorder %s59, %s62
    %p71 = scmp.eq.s32.totalorder %s12, 1
    %p72 = por %p70, %p71
    %p73 = scmp.ne.s32.totalorder %s62, %s63
    %p74 = scmp.eq.s32.totalorder %s12, 0
    %p75 = por %p73, %p74
    %p76 = scmp.ne.s32.totalorder %s62, %s63
    %p77 = scmp.eq.s32.totalorder %s13, 1
    %p78 = por %p76, %p77
    %p80 = scmp.ne.s32.totalorder %s63, %s79
    %p81 = scmp.eq.s32.totalorder %s13, 0
    %p82 = por %p80, %p81
    %p83 = scmp.le.s32.totalorder 1, %s7
    %p84 = scmp.lt.s32.totalorder %s7, 3
    %p85 = pnand %p83, %p84
    %p86 = pneg %p85
    // Predicated region
    $region9: #{tpu_custom_call.1} parent=5 // pred_check
      _
    $region10: #{tpu_custom_call.1} parent=5 // pred_check_branch
      %88 = sbr.rel (%p85) target = $region12
    $region11: #{tpu_custom_call.1} parent=5 // pred_region
      %s89 = ssub.s32 %s7, 1
    $region12: #{tpu_custom_call.1} parent=5 // pred_fallthru
      _
    %p90 = scmp.lt.s32.totalorder %s7, 2
    // Predicated region
    $region13: #{tpu_custom_call.1} parent=5 // pred_check
      %p91 = pneg %p90
    $region14: #{tpu_custom_call.1} parent=5 // pred_check_branch
      %93 = sbr.rel (%p91) target = $region16
    $region15: #{tpu_custom_call.1} parent=5 // pred_region
      // Predicated region
      $region17: #{tpu_custom_call.1} parent=15 // pred_check
        %p94 = pneg %p41
      $region18: #{tpu_custom_call.1} parent=15 // pred_check_branch
        %96 = sbr.rel (%p94) target = $region20
      $region19: #{tpu_custom_call.1} parent=15 // pred_region
        %s97 = smul.u32 8, %s15
        %p98 = scmp.lt.s32.totalorder %s14, 1
        %s99 = scalar_select %p98, %s14, 1
        %p100 = scmp.lt.s32.totalorder %s97, 7
        %s101 = scalar_select %p100, %s97, 7
        %s102 = smul.addr %s99, 8
        %s103 = sadd.s32 %s101, %s102
        %s104 = smul.addr %s103, 8
        %s105 = scalar_lea.vmem %s0, %s104
        %s106 = smul.u32 8, %s15
      $region20: #{tpu_custom_call.1} parent=15 // pred_fallthru
        _
    $region16: #{tpu_custom_call.1} parent=5 // pred_fallthru
      _
    %p107 = scmp.le.s32.totalorder 1, %s7
    %p108 = scmp.lt.s32.totalorder %s7, 3
    %p109 = pnand %p107, %p108
    %p110 = pneg %p109
    // Predicated region
    $region21: #{tpu_custom_call.1} parent=5 // pred_check
      _
    $region22: #{tpu_custom_call.1} parent=5 // pred_check_branch
      %112 = sbr.rel (%p109) target = $region24
    $region23: #{tpu_custom_call.1} parent=5 // pred_region
      %s113 = ssub.s32 %s7, 1
      %s114 = smul.u32 8, %s17
      %p115 = scmp.lt.s32.totalorder %s16, 1
      %s116 = scalar_select %p115, %s16, 1
      %p117 = scmp.lt.s32.totalorder %s114, 7
      %s118 = scalar_select %p117, %s114, 7
      %s119 = smul.addr %s116, 8
      %s120 = sadd.s32 %s118, %s119
      %s121 = smul.addr %s120, 8
      %s122 = scalar_lea.vmem %s0, %s121
      %p123 = pneg %p47
      %p124 = pneg %p44
      %p125 = pneg %p75
      %p126 = pneg %p72
      %s127 = smul.u32 4, %s17
      %p128 = scmp.lt.s32.totalorder %s16, 1
      %s129 = scalar_select %p128, %s16, 1
      %p130 = scmp.lt.s32.totalorder %s127, 3
      %s131 = scalar_select %p130, %s127, 3
      %s132 = smul.addr %s129, 16
      %s133 = sadd.s32 %s131, %s132
      %s134 = smul.addr %s133, 8
      %s135 = scalar_lea.vmem %s1, %s134
      %s136 = smul.u32 8, %s17
      %p137 = scmp.lt.s32.totalorder %s16, 1
      %s138 = scalar_select %p137, %s16, 1
      %p139 = scmp.lt.s32.totalorder %s136, 7
      %s140 = scalar_select %p139, %s136, 7
      %s141 = smul.addr %s138, 8
      %s142 = sadd.s32 %s140, %s141
      %s143 = smul.addr %s142, 8
      %s144 = scalar_lea.vmem %s0, %s143
      %s145 = smul.u32 8, %s17
      %s146 = smul.u32 4, %s17
      %p147 = scmp.lt.s32.totalorder %s16, 1
      %s148 = scalar_select %p147, %s16, 1
      %p149 = scmp.lt.s32.totalorder %s146, 3
      %s150 = scalar_select %p149, %s146, 3
      %s151 = smul.addr %s148, 16
      %s152 = sadd.s32 %s150, %s151
      %s153 = smul.addr %s152, 8
      %s154 = scalar_lea.vmem %s1, %s153
      %s155 = smul.u32 4, %s17
      %v156 = vlaneseq
      %v157 = vshrl.u32 %v156, 7
      %v158 = vadd.s32 %v157, 8
      %v159 = vlaneseq
      %v160 = vand.u32 %v159, 127
      %v161 = vmul.u32 %v160, 2
      %vm162 = vcmp.eq.s32.totalorder %v157, %v161
      %vm163 = vcmp.eq.s32.totalorder %v158, %v161
      %v164 = vsel %vm162, 1.0, 0.0
      %v165 = vsel %vm163, 1.0, 0.0
      %v166 = vadd.s32 %v161, 1
      %vm167 = vcmp.eq.s32.totalorder %v157, %v166
      %vm168 = vcmp.eq.s32.totalorder %v158, %v166
      %v169 = vsel %vm167, 1.0, 0.0
      %v170 = vsel %vm168, 1.0, 0.0
      %v171 = vld [vmem:[%s144] ss:$2 sm:$0xff]
      %s172 = scalar_lea.vmem %s144, 16
      %v173 = vld [vmem:[%s172] ss:$2 sm:$0xff]
      %s174 = scalar_lea.vmem %s144, 32
      %v175 = vld [vmem:[%s174] ss:$2 sm:$0xff]
      %s176 = scalar_lea.vmem %s144, 48
      %v177 = vld [vmem:[%s176] ss:$2 sm:$0xff]
      %vm178 = vcmask 130048
      %v180 = vsel %vm178, %v171, 0
      %v183 = vsel %vm178, %v173, 0
      %v186 = vsel %vm178, %v175, 0
      %v189 = vsel %vm178, %v177, 0
      %191 = vmatprep.subr.mxu0 0.0
      %192 = vmatpush1.msra.mxu0 %v164
      %193 = vmatprep.subr.mxu0 0.0
      %194 = vmatpush1.msra.mxu0 %v165
      %195 = vmatprep.subr.mxu0 0.0
      %196 = vmatpush1.msra.mxu0 0.0
      %197 = vmatprep.subr.mxu0 0.0
      %198 = vmatpush1.msra.mxu0 0.0
      %199 = vmatprep.subr.mxu0 0.0
      %200 = vmatpush1.msra.mxu0 0.0
      %201 = vmatprep.subr.mxu0 0.0
      %202 = vmatpush1.msra.mxu0 0.0
      %203 = vmatprep.subr.mxu0 0.0
      %204 = vmatpush1.msra.mxu0 0.0
      %205 = vmatprep.subr.mxu0 0.0
      %206 = vmatpush1.msra.mxu0 0.0
      %207 = vmatprep.subr.mxu0 0.0
      %208 = vmatpush1.msra.mxu0 0.0
      %209 = vmatprep.subr.mxu0 0.0
      %210 = vmatpush1.msra.mxu0 0.0
      %211 = vmatprep.subr.mxu0 0.0
      %212 = vmatpush1.msra.mxu0 0.0
      %213 = vmatprep.subr.mxu0 0.0
      %214 = vmatpush1.msra.mxu0 0.0
      %215 = vmatprep.subr.mxu0 0.0
      %216 = vmatpush1.msra.mxu0 0.0
      %217 = vmatprep.subr.mxu0 0.0
      %218 = vmatpush1.msra.mxu0 0.0
      %219 = vmatprep.subr.mxu0 0.0
      %220 = vmatpush1.msra.mxu0 0.0
      %221 = vmatprep.subr.mxu0 0.0
      %222 = vmatpush1.msra.mxu0 0.0
      %223 = vmatprep.subr.mxu0 0.0
      %224 = vmatpush1.msra.mxu0 0.0
      %225 = vmatprep.subr.mxu0 0.0
      %226 = vmatpush1.msra.mxu0 0.0
      %227 = vmatprep.subr.mxu0 0.0
      %228 = vmatpush1.msra.mxu0 0.0
      %229 = vmatprep.subr.mxu0 0.0
      %230 = vmatpush1.msra.mxu0 0.0
      %231 = vmatprep.subr.mxu0 0.0
      %232 = vmatpush1.msra.mxu0 0.0
      %233 = vmatprep.subr.mxu0 0.0
      %234 = vmatpush1.msra.mxu0 0.0
      %235 = vmatprep.subr.mxu0 0.0
      %236 = vmatpush1.msra.mxu0 0.0
      %237 = vmatprep.subr.mxu0 0.0
      %238 = vmatpush1.msra.mxu0 0.0
      %239 = vmatprep.subr.mxu0 0.0
      %240 = vmatpush1.msra.mxu0 0.0
      %241 = vmatprep.subr.mxu0 0.0
      %242 = vmatpush1.msra.mxu0 0.0
      %243 = vmatprep.subr.mxu0 0.0
      %244 = vmatpush1.msra.mxu0 0.0
      %245 = vmatprep.subr.mxu0 0.0
      %246 = vmatpush1.msra.mxu0 0.0
      %247 = vmatprep.subr.mxu0 0.0
      %248 = vmatpush1.msra.mxu0 0.0
      %249 = vmatprep.subr.mxu0 0.0
      %250 = vmatpush1.msra.mxu0 0.0
      %251 = vmatprep.subr.mxu0 0.0
      %252 = vmatpush1.msra.mxu0 0.0
      %253 = vmatprep.subr.mxu0 0.0
      %254 = vmatpush1.msra.mxu0 0.0
      %255 = vmatprep.mubr.f32.mxu0 0.0
      %256 = vmatmul.mubr.f32.gmra.mrb[0].mxu0 %v180
      %v257 = vpop.f32.mrb[0].mxu0
      %v258 = vadd.f32 0.0, %v257
      %v259 = vpop.f32.mrb[0].mxu0
      %260 = vmatprep.mubr.f32.mxu0 0.0
      %261 = vmatmul.mubr.f32.gmra.mrb[0].mxu0 %v183
      %v262 = vpop.f32.mrb[0].mxu0
      %v263 = vadd.f32 0.0, %v262
      %v264 = vpop.f32.mrb[0].mxu0
      %265 = vmatprep.mubr.f32.mxu0 0.0
      %266 = vmatmul.mubr.f32.gmra.mrb[0].mxu0 %v186
      %v267 = vpop.f32.mrb[0].mxu0
      %v268 = vadd.f32 0.0, %v267
      %v269 = vpop.f32.mrb[0].mxu0
      %270 = vmatprep.mubr.f32.mxu0 0.0
      %271 = vmatmul.mubr.f32.gmra.mrb[0].mxu0 %v189
      %v272 = vpop.f32.mrb[0].mxu0
      %v273 = vadd.f32 0.0, %v272
      %v274 = vpop.f32.mrb[0].mxu0
      %275 = vdwg.mxu0
      %vm276 = vcmask 64512
      %277 = vst.msk [vmem:[%s154] sm:$0xff] %vm276, %v258
      %278 = vst.msk [vmem:[%s154 + $0x8] sm:$0xff] %vm276, %v263
      %279 = vst.msk [vmem:[%s154 + $0x10] sm:$0xff] %vm276, %v268
      %280 = vst.msk [vmem:[%s154 + $0x18] sm:$0xff] %vm276, %v273
      %281 = vmatprep.subr.mxu0 0.0
      %282 = vmatpush1.msra.mxu0 %v169
      %283 = vmatprep.subr.mxu0 0.0
      %284 = vmatpush1.msra.mxu0 %v170
      %285 = vmatprep.subr.mxu0 0.0
      %286 = vmatpush1.msra.mxu0 0.0
      %287 = vmatprep.subr.mxu0 0.0
      %288 = vmatpush1.msra.mxu0 0.0
      %289 = vmatprep.subr.mxu0 0.0
      %290 = vmatpush1.msra.mxu0 0.0
      %291 = vmatprep.subr.mxu0 0.0
      %292 = vmatpush1.msra.mxu0 0.0
      %293 = vmatprep.subr.mxu0 0.0
      %294 = vmatpush1.msra.mxu0 0.0
      %295 = vmatprep.subr.mxu0 0.0
      %296 = vmatpush1.msra.mxu0 0.0
      %297 = vmatprep.subr.mxu0 0.0
      %298 = vmatpush1.msra.mxu0 0.0
      %299 = vmatprep.subr.mxu0 0.0
      %300 = vmatpush1.msra.mxu0 0.0
      %301 = vmatprep.subr.mxu0 0.0
      %302 = vmatpush1.msra.mxu0 0.0
      %303 = vmatprep.subr.mxu0 0.0
      %304 = vmatpush1.msra.mxu0 0.0
      %305 = vmatprep.subr.mxu0 0.0
      %306 = vmatpush1.msra.mxu0 0.0
      %307 = vmatprep.subr.mxu0 0.0
      %308 = vmatpush1.msra.mxu0 0.0
      %309 = vmatprep.subr.mxu0 0.0
      %310 = vmatpush1.msra.mxu0 0.0
      %311 = vmatprep.subr.mxu0 0.0
      %312 = vmatpush1.msra.mxu0 0.0
      %313 = vmatprep.subr.mxu0 0.0
      %314 = vmatpush1.msra.mxu0 0.0
      %315 = vmatprep.subr.mxu0 0.0
      %316 = vmatpush1.msra.mxu0 0.0
      %317 = vmatprep.subr.mxu0 0.0
      %318 = vmatpush1.msra.mxu0 0.0
      %319 = vmatprep.subr.mxu0 0.0
      %320 = vmatpush1.msra.mxu0 0.0
      %321 = vmatprep.subr.mxu0 0.0
      %322 = vmatpush1.msra.mxu0 0.0
      %323 = vmatprep.subr.mxu0 0.0
      %324 = vmatpush1.msra.mxu0 0.0
      %325 = vmatprep.subr.mxu0 0.0
      %326 = vmatpush1.msra.mxu0 0.0
      %327 = vmatprep.subr.mxu0 0.0
      %328 = vmatpush1.msra.mxu0 0.0
      %329 = vmatprep.subr.mxu0 0.0
      %330 = vmatpush1.msra.mxu0 0.0
      %331 = vmatprep.subr.mxu0 0.0
      %332 = vmatpush1.msra.mxu0 0.0
      %333 = vmatprep.subr.mxu0 0.0
      %334 = vmatpush1.msra.mxu0 0.0
      %335 = vmatprep.subr.mxu0 0.0
      %336 = vmatpush1.msra.mxu0 0.0
      %337 = vmatprep.subr.mxu0 0.0
      %338 = vmatpush1.msra.mxu0 0.0
      %339 = vmatprep.subr.mxu0 0.0
      %340 = vmatpush1.msra.mxu0 0.0
      %341 = vmatprep.subr.mxu0 0.0
      %342 = vmatpush1.msra.mxu0 0.0
      %343 = vmatprep.subr.mxu0 0.0
      %344 = vmatpush1.msra.mxu0 0.0
      %345 = vmatprep.mubr.f32.mxu0 0.0
      %346 = vmatmul.mubr.f32.gmra.mrb[0].mxu0 %v180
      %v347 = vpop.f32.mrb[0].mxu0
      %v348 = vadd.f32 0.0, %v347
      %v349 = vpop.f32.mrb[0].mxu0
      %350 = vmatprep.mubr.f32.mxu0 0.0
      %351 = vmatmul.mubr.f32.gmra.mrb[0].mxu0 %v183
      %v352 = vpop.f32.mrb[0].mxu0
      %v353 = vadd.f32 0.0, %v352
      %v354 = vpop.f32.mrb[0].mxu0
      %355 = vmatprep.mubr.f32.mxu0 0.0
      %356 = vmatmul.mubr.f32.gmra.mrb[0].mxu0 %v186
      %v357 = vpop.f32.mrb[0].mxu0
      %v358 = vadd.f32 0.0, %v357
      %v359 = vpop.f32.mrb[0].mxu0
      %360 = vmatprep.mubr.f32.mxu0 0.0
      %361 = vmatmul.mubr.f32.gmra.mrb[0].mxu0 %v189
      %v362 = vpop.f32.mrb[0].mxu0
      %v363 = vadd.f32 0.0, %v362
      %v364 = vpop.f32.mrb[0].mxu0
      %365 = vdwg.mxu0
      %s366 = scalar_lea.vmem %s154, 32
      %367 = vst.msk [vmem:[%s366] sm:$0xff] %vm276, %v348
      %368 = vst.msk [vmem:[%s366 + $0x8] sm:$0xff] %vm276, %v353
      %369 = vst.msk [vmem:[%s366 + $0x10] sm:$0xff] %vm276, %v358
      %370 = vst.msk [vmem:[%s366 + $0x18] sm:$0xff] %vm276, %v363
      %s371 = scalar_lea.vmem %s144, 1
      %v372 = vld [vmem:[%s371] ss:$2 sm:$0xff]
      %s373 = scalar_lea.vmem %s144, 17
      %v374 = vld [vmem:[%s373] ss:$2 sm:$0xff]
      %s375 = scalar_lea.vmem %s144, 33
      %v376 = vld [vmem:[%s375] ss:$2 sm:$0xff]
      %s377 = scalar_lea.vmem %s144, 49
      %v378 = vld [vmem:[%s377] ss:$2 sm:$0xff]
      %v380 = vsel %vm178, %v372, 0
      %v383 = vsel %vm178, %v374, 0
      %v386 = vsel %vm178, %v376, 0
      %v389 = vsel %vm178, %v378, 0
      %391 = vmatprep.subr.mxu0 0.0
      %392 = vmatpush1.msra.mxu0 %v164
      %393 = vmatprep.subr.mxu0 0.0
      %394 = vmatpush1.msra.mxu0 %v165
      %395 = vmatprep.subr.mxu0 0.0
      %396 = vmatpush1.msra.mxu0 0.0
      %397 = vmatprep.subr.mxu0 0.0
      %398 = vmatpush1.msra.mxu0 0.0
      %399 = vmatprep.subr.mxu0 0.0
      %400 = vmatpush1.msra.mxu0 0.0
      %401 = vmatprep.subr.mxu0 0.0
      %402 = vmatpush1.msra.mxu0 0.0
      %403 = vmatprep.subr.mxu0 0.0
      %404 = vmatpush1.msra.mxu0 0.0
      %405 = vmatprep.subr.mxu0 0.0
      %406 = vmatpush1.msra.mxu0 0.0
      %407 = vmatprep.subr.mxu0 0.0
      %408 = vmatpush1.msra.mxu0 0.0
      %409 = vmatprep.subr.mxu0 0.0
      %410 = vmatpush1.msra.mxu0 0.0
      %411 = vmatprep.subr.mxu0 0.0
      %412 = vmatpush1.msra.mxu0 0.0
      %413 = vmatprep.subr.mxu0 0.0
      %414 = vmatpush1.msra.mxu0 0.0
      %415 = vmatprep.subr.mxu0 0.0
      %416 = vmatpush1.msra.mxu0 0.0
      %417 = vmatprep.subr.mxu0 0.0
      %418 = vmatpush1.msra.mxu0 0.0
      %419 = vmatprep.subr.mxu0 0.0
      %420 = vmatpush1.msra.mxu0 0.0
      %421 = vmatprep.subr.mxu0 0.0
      %422 = vmatpush1.msra.mxu0 0.0
      %423 = vmatprep.subr.mxu0 0.0
      %424 = vmatpush1.msra.mxu0 0.0
      %425 = vmatprep.subr.mxu0 0.0
      %426 = vmatpush1.msra.mxu0 0.0
      %427 = vmatprep.subr.mxu0 0.0
      %428 = vmatpush1.msra.mxu0 0.0
      %429 = vmatprep.subr.mxu0 0.0
      %430 = vmatpush1.msra.mxu0 0.0
      %431 = vmatprep.subr.mxu0 0.0
      %432 = vmatpush1.msra.mxu0 0.0
      %433 = vmatprep.subr.mxu0 0.0
      %434 = vmatpush1.msra.mxu0 0.0
      %435 = vmatprep.subr.mxu0 0.0
      %436 = vmatpush1.msra.mxu0 0.0
      %437 = vmatprep.subr.mxu0 0.0
      %438 = vmatpush1.msra.mxu0 0.0
      %439 = vmatprep.subr.mxu0 0.0
      %440 = vmatpush1.msra.mxu0 0.0
      %441 = vmatprep.subr.mxu0 0.0
      %442 = vmatpush1.msra.mxu0 0.0
      %443 = vmatprep.subr.mxu0 0.0
      %444 = vmatpush1.msra.mxu0 0.0
      %445 = vmatprep.subr.mxu0 0.0
      %446 = vmatpush1.msra.mxu0 0.0
      %447 = vmatprep.subr.mxu0 0.0
      %448 = vmatpush1.msra.mxu0 0.0
      %449 = vmatprep.subr.mxu0 0.0
      %450 = vmatpush1.msra.mxu0 0.0
      %451 = vmatprep.subr.mxu0 0.0
      %452 = vmatpush1.msra.mxu0 0.0
      %453 = vmatprep.subr.mxu0 0.0
      %454 = vmatpush1.msra.mxu0 0.0
      %455 = vmatprep.mubr.f32.mxu0 0.0
      %456 = vmatmul.mubr.f32.gmra.mrb[0].mxu0 %v380
      %v457 = vpop.f32.mrb[0].mxu0
      %v458 = vadd.f32 0.0, %v457
      %v459 = vpop.f32.mrb[0].mxu0
      %460 = vmatprep.mubr.f32.mxu0 0.0
      %461 = vmatmul.mubr.f32.gmra.mrb[0].mxu0 %v383
      %v462 = vpop.f32.mrb[0].mxu0
      %v463 = vadd.f32 0.0, %v462
      %v464 = vpop.f32.mrb[0].mxu0
      %465 = vmatprep.mubr.f32.mxu0 0.0
      %466 = vmatmul.mubr.f32.gmra.mrb[0].mxu0 %v386
      %v467 = vpop.f32.mrb[0].mxu0
      %v468 = vadd.f32 0.0, %v467
      %v469 = vpop.f32.mrb[0].mxu0
      %470 = vmatprep.mubr.f32.mxu0 0.0
      %471 = vmatmul.mubr.f32.gmra.mrb[0].mxu0 %v389
      %v472 = vpop.f32.mrb[0].mxu0
      %v473 = vadd.f32 0.0, %v472
      %v474 = vpop.f32.mrb[0].mxu0
      %475 = vdwg.mxu0
      %s476 = scalar_lea.vmem %s154, 64
      %477 = vst.msk [vmem:[%s476] sm:$0xff] %vm276, %v458
      %478 = vst.msk [vmem:[%s476 + $0x8] sm:$0xff] %vm276, %v463
      %479 = vst.msk [vmem:[%s476 + $0x10] sm:$0xff] %vm276, %v468
      %480 = vst.msk [vmem:[%s476 + $0x18] sm:$0xff] %vm276, %v473
      %481 = vmatprep.subr.mxu0 0.0
      %482 = vmatpush1.msra.mxu0 %v169
      %483 = vmatprep.subr.mxu0 0.0
      %484 = vmatpush1.msra.mxu0 %v170
      %485 = vmatprep.subr.mxu0 0.0
      %486 = vmatpush1.msra.mxu0 0.0
      %487 = vmatprep.subr.mxu0 0.0
      %488 = vmatpush1.msra.mxu0 0.0
      %489 = vmatprep.subr.mxu0 0.0
      %490 = vmatpush1.msra.mxu0 0.0
      %491 = vmatprep.subr.mxu0 0.0
      %492 = vmatpush1.msra.mxu0 0.0
      %493 = vmatprep.subr.mxu0 0.0
      %494 = vmatpush1.msra.mxu0 0.0
      %495 = vmatprep.subr.mxu0 0.0
      %496 = vmatpush1.msra.mxu0 0.0
      %497 = vmatprep.subr.mxu0 0.0
      %498 = vmatpush1.msra.mxu0 0.0
      %499 = vmatprep.subr.mxu0 0.0
      %500 = vmatpush1.msra.mxu0 0.0
      %501 = vmatprep.subr.mxu0 0.0
      %502 = vmatpush1.msra.mxu0 0.0
      %503 = vmatprep.subr.mxu0 0.0
      %504 = vmatpush1.msra.mxu0 0.0
      %505 = vmatprep.subr.mxu0 0.0
      %506 = vmatpush1.msra.mxu0 0.0
      %507 = vmatprep.subr.mxu0 0.0
      %508 = vmatpush1.msra.mxu0 0.0
      %509 = vmatprep.subr.mxu0 0.0
      %510 = vmatpush1.msra.mxu0 0.0
      %511 = vmatprep.subr.mxu0 0.0
      %512 = vmatpush1.msra.mxu0 0.0
      %513 = vmatprep.subr.mxu0 0.0
      %514 = vmatpush1.msra.mxu0 0.0
      %515 = vmatprep.subr.mxu0 0.0
      %516 = vmatpush1.msra.mxu0 0.0
      %517 = vmatprep.subr.mxu0 0.0
      %518 = vmatpush1.msra.mxu0 0.0
      %519 = vmatprep.subr.mxu0 0.0
      %520 = vmatpush1.msra.mxu0 0.0
      %521 = vmatprep.subr.mxu0 0.0
      %522 = vmatpush1.msra.mxu0 0.0
      %523 = vmatprep.subr.mxu0 0.0
      %524 = vmatpush1.msra.mxu0 0.0
      %525 = vmatprep.subr.mxu0 0.0
      %526 = vmatpush1.msra.mxu0 0.0
      %527 = vmatprep.subr.mxu0 0.0
      %528 = vmatpush1.msra.mxu0 0.0
      %529 = vmatprep.subr.mxu0 0.0
      %530 = vmatpush1.msra.mxu0 0.0
      %531 = vmatprep.subr.mxu0 0.0
      %532 = vmatpush1.msra.mxu0 0.0
      %533 = vmatprep.subr.mxu0 0.0
      %534 = vmatpush1.msra.mxu0 0.0
      %535 = vmatprep.subr.mxu0 0.0
      %536 = vmatpush1.msra.mxu0 0.0
      %537 = vmatprep.subr.mxu0 0.0
      %538 = vmatpush1.msra.mxu0 0.0
      %539 = vmatprep.subr.mxu0 0.0
      %540 = vmatpush1.msra.mxu0 0.0
      %541 = vmatprep.subr.mxu0 0.0
      %542 = vmatpush1.msra.mxu0 0.0
      %543 = vmatprep.subr.mxu0 0.0
      %544 = vmatpush1.msra.mxu0 0.0
      %545 = vmatprep.mubr.f32.mxu0 0.0
      %546 = vmatmul.mubr.f32.gmra.mrb[0].mxu0 %v380
      %v547 = vpop.f32.mrb[0].mxu0
      %v548 = vadd.f32 0.0, %v547
      %v549 = vpop.f32.mrb[0].mxu0
      %550 = vmatprep.mubr.f32.mxu0 0.0
      %551 = vmatmul.mubr.f32.gmra.mrb[0].mxu0 %v383
      %v552 = vpop.f32.mrb[0].mxu0
      %v553 = vadd.f32 0.0, %v552
      %v554 = vpop.f32.mrb[0].mxu0
      %555 = vmatprep.mubr.f32.mxu0 0.0
      %556 = vmatmul.mubr.f32.gmra.mrb[0].mxu0 %v386
      %v557 = vpop.f32.mrb[0].mxu0
      %v558 = vadd.f32 0.0, %v557
      %v559 = vpop.f32.mrb[0].mxu0
      %560 = vmatprep.mubr.f32.mxu0 0.0
      %561 = vmatmul.mubr.f32.gmra.mrb[0].mxu0 %v389
      %v562 = vpop.f32.mrb[0].mxu0
      %v563 = vadd.f32 0.0, %v562
      %v564 = vpop.f32.mrb[0].mxu0
      %565 = vdwg.mxu0
      %s566 = scalar_lea.vmem %s154, 96
      %567 = vst.msk [vmem:[%s566] sm:$0xff] %vm276, %v548
      %568 = vst.msk [vmem:[%s566 + $0x8] sm:$0xff] %vm276, %v553
      %569 = vst.msk [vmem:[%s566 + $0x10] sm:$0xff] %vm276, %v558
      %570 = vst.msk [vmem:[%s566 + $0x18] sm:$0xff] %vm276, %v563
      %s571 = smul.u32 4, %s17
      %p572 = scmp.lt.s32.totalorder %s16, 1
      %s573 = scalar_select %p572, %s16, 1
      %p574 = scmp.lt.s32.totalorder %s571, 3
      %s575 = scalar_select %p574, %s571, 3
      %s576 = smul.addr %s573, 16
      %s577 = sadd.s32 %s575, %s576
      %s578 = smul.addr %s577, 8
      %s579 = scalar_lea.vmem %s1, %s578
      // Predicated region
      $region25: #{tpu_custom_call.1} parent=23 // pred_check
        %p580 = pneg %p72
      $region26: #{tpu_custom_call.1} parent=23 // pred_check_branch
        %582 = sbr.rel (%p580) target = $region28
      $region27: #{tpu_custom_call.1} parent=23 // pred_region
        %s583 = smul.u32 4, %s17
      $region28: #{tpu_custom_call.1} parent=23 // pred_fallthru
        _
    $region24: #{tpu_custom_call.1} parent=5 // pred_fallthru
      _
    %p584 = scmp.le.s32.totalorder 2, %s7
    // Predicated region
    $region29: #{tpu_custom_call.1} parent=5 // pred_check
      %p585 = pneg %p584
    $region30: #{tpu_custom_call.1} parent=5 // pred_check_branch
      %587 = sbr.rel (%p585) target = $region32
    $region31: #{tpu_custom_call.1} parent=5 // pred_region
      %s588 = ssub.s32 %s7, 2
      // Predicated region
      $region33: #{tpu_custom_call.1} parent=31 // pred_check
        %p589 = pneg %p78
      $region34: #{tpu_custom_call.1} parent=31 // pred_check_branch
        %591 = sbr.rel (%p589) target = $region36
      $region35: #{tpu_custom_call.1} parent=31 // pred_region
        %s592 = smul.u32 4, %s19
        %p593 = scmp.lt.s32.totalorder %s18, 1
        %s594 = scalar_select %p593, %s18, 1
        %p595 = scmp.lt.s32.totalorder %s592, 3
        %s596 = scalar_select %p595, %s592, 3
        %s597 = smul.addr %s594, 16
        %s598 = sadd.s32 %s596, %s597
        %s599 = smul.addr %s598, 8
        %s600 = scalar_lea.vmem %s1, %s599
      $region36: #{tpu_custom_call.1} parent=31 // pred_fallthru
        _
    $region32: #{tpu_custom_call.1} parent=5 // pred_fallthru
      _
  $region6: #{tpu_custom_call.1} parent=0 // loop_footer
    %s11 = sadd.s32 1, %s7
  $region7: #{tpu_custom_call.1} parent=0 // loop_footer_branch
    %6 = sbr.rel target = $region3
  $region8: #{tpu_custom_call.1} parent=0 // loop_exit
    _

</llo_original>
